<compile_context>
chip_gen: v7x
topology: tpu7x:2x2x1
jax: 0.10.0
libtpu: 0.0.40
codegen_flags: <defaults>
</compile_context>

<pallas_src>
import functools

import numpy as np
import jax
import jax.numpy as jnp
from jax.experimental import pallas as pl
from jax.experimental.pallas import tpu as pltpu

PHI = (1.0 + np.sqrt(5.0)) / 2.0
LN_EPS = 1e-5
DIM = 64             # module default dim
PACK = 2             # logical rows packed per physical 128-lane row
LANES = DIM * PACK   # 128


def quantum_unity_kernel(x_ref, w_ref, b_ref, g1_ref, b1_ref, g2_ref, b2_ref,
                         o_ref):
    x = x_ref[...]                                        # (TB, 128), 2 rows/row
    # Linear: two independent 64x64 matmuls via the block-diagonal weight.
    h = jnp.dot(x, w_ref[...],
                preferred_element_type=jnp.float32) + b_ref[...]

    # Per-half (segmented) LayerNorm.  `lo` marks lanes [0, 64).
    lane = jax.lax.broadcasted_iota(jnp.int32, h.shape, 1)
    lo = lane < DIM
    inv_d = jnp.float32(1.0 / DIM)

    sum_all = jnp.sum(h, axis=-1, keepdims=True)
    sum_lo = jnp.sum(jnp.where(lo, h, 0.0), axis=-1, keepdims=True)
    mean = jnp.where(lo, sum_lo, sum_all - sum_lo) * inv_d
    c = h - mean
    c2 = c * c
    ss_all = jnp.sum(c2, axis=-1, keepdims=True)
    ss_lo = jnp.sum(jnp.where(lo, c2, 0.0), axis=-1, keepdims=True)
    var = jnp.where(lo, ss_lo, ss_all - ss_lo) * inv_d
    hn = c * jax.lax.rsqrt(var + LN_EPS)

    # Quantum activation with phi folded into the affine params:
    #   sin((hn*gamma + beta)*phi) + cos((hn*gamma + beta)/phi)
    psi = (jnp.sin(hn * g1_ref[...] + b1_ref[...])
           + jnp.cos(hn * g2_ref[...] + b2_ref[...]))

    # proj * unity == (sum_half(psi)/sqrt(D)) * (1/sqrt(D)) == sum_half(psi)/D
    p_all = jnp.sum(psi, axis=-1, keepdims=True)
    p_lo = jnp.sum(jnp.where(lo, psi, 0.0), axis=-1, keepdims=True)
    o_ref[...] = jnp.where(lo, p_lo, p_all - p_lo) * inv_d   # (TB, 128)


@functools.partial(jax.jit, static_argnames=("tile_rows",))
def quantum_neural_unity(x, w_t, b, gamma, beta, phi, *, tile_rows=1024):
    """x: (B, 64) f32; w_t = W^T: (64, 64); b/gamma/beta: (1, 64); phi: (1,)."""
    B, D = x.shape
    assert D == DIM, "kernel is specialized for the module default dim=64"

    # ---- host-side packing: lane-dense 128-wide layout + phi fold ----
    n_rows = -(-B // PACK)                         # packed rows needed
    tile_rows = max(8, (-(-tile_rows // 8)) * 8)   # multiple of 8 (sublane)
    tile = min(tile_rows, (-(-n_rows // 8)) * 8)
    if n_rows > 8:
        # keep at least 2 grid steps so both TensorCores get work (megacore)
        half = -(-((n_rows + 1) // 2) // 8) * 8
        tile = min(tile, max(8, half))
    n_tiles = -(-n_rows // tile)
    rows_pad = n_tiles * tile
    b_pad = rows_pad * PACK
    if b_pad != B:
        x = jnp.pad(x, ((0, b_pad - B), (0, 0)))
    x_packed = x.reshape(rows_pad, LANES)

    w_big = jnp.zeros((LANES, LANES), jnp.float32)
    w_big = w_big.at[:D, :D].set(w_t).at[D:, D:].set(w_t)

    def pack_vec(v):
        return jnp.concatenate([v, v], axis=-1).astype(jnp.float32)  # (1, 128)

    phi_s = phi[0]
    b_p = pack_vec(b)
    g_p = pack_vec(gamma)
    beta_p = pack_vec(beta)
    g1, b1 = g_p * phi_s, beta_p * phi_s
    g2, b2 = g_p / phi_s, beta_p / phi_s

    param_spec = pl.BlockSpec((1, LANES), lambda i: (0, 0))

    out_packed = pl.pallas_call(
        quantum_unity_kernel,
        out_shape=jax.ShapeDtypeStruct((rows_pad, LANES), jnp.float32),
        grid_spec=pltpu.PrefetchScalarGridSpec(
            num_scalar_prefetch=0,
            grid=(n_tiles,),
            in_specs=[
                pl.BlockSpec((tile, LANES), lambda i: (i, 0)),    # packed x
                pl.BlockSpec((LANES, LANES), lambda i: (0, 0)),   # block-diag W^T
                param_spec,   # bias          (1,128)
                param_spec,   # gamma * phi   (1,128)
                param_spec,   # beta  * phi   (1,128)
                param_spec,   # gamma / phi   (1,128)
                param_spec,   # beta  / phi   (1,128)
            ],
            out_specs=pl.BlockSpec((tile, LANES), lambda i: (i, 0)),
        ),
        compiler_params=pltpu.CompilerParams(
            dimension_semantics=("parallel",)),
    )(x_packed, w_big, b_p, g1, b1, g2, b2)

    # Unpack: (rows_pad, 128) -> (2*rows_pad, 64) -> first B rows.
    return out_packed.reshape(b_pad, D)[:B]


def reference_forward(x, w_t, b, gamma, beta, phi):
    """Pure-JAX reference matching the PyTorch module."""
    d = x.shape[-1]
    h = x @ w_t + b
    mean = jnp.mean(h, axis=-1, keepdims=True)
    var = jnp.mean((h - mean) ** 2, axis=-1, keepdims=True)
    hn = (h - mean) / jnp.sqrt(var + LN_EPS)
    hn = hn * gamma + beta
    psi = jnp.sin(hn * phi[0]) + jnp.cos(hn / phi[0])
    unity = jnp.ones_like(psi) / jnp.sqrt(jnp.float32(d))
    proj = jnp.sum(psi * unity, axis=-1, keepdims=True)
    return proj * unity


if __name__ == "__main__":
    B, D = 8, 64   # module default dim=64; small batch

    key = jax.random.PRNGKey(0)
    kx, kw, kb, kg, kbe = jax.random.split(key, 5)

    # Deterministic synthetic params.  x / W are rounded to bf16-representable
    # values so the MXU's f32 pass-splitting choice cannot move the
    # kernel-vs-reference comparison outside tolerance.
    x = jax.random.normal(kx, (B, D), dtype=jnp.float32)
    x = x.astype(jnp.bfloat16).astype(jnp.float32)
    w = jax.random.normal(kw, (D, D), dtype=jnp.float32) * (1.0 / np.sqrt(D))
    w = w.astype(jnp.bfloat16).astype(jnp.float32)
    w_t = w.T                                   # nn.Linear weight is (out, in)
    b = jax.random.normal(kb, (1, D), dtype=jnp.float32) * 0.1
    gamma = 1.0 + 0.1 * jax.random.normal(kg, (1, D), dtype=jnp.float32)
    beta = 0.1 * jax.random.normal(kbe, (1, D), dtype=jnp.float32)
    phi = jnp.array([PHI], dtype=jnp.float32)   # nn.Parameter([PHI])

    out = quantum_neural_unity(x, w_t, b, gamma, beta, phi)
    out = jax.block_until_ready(out)
    assert out.shape == (B, D)

    ref = reference_forward(x, w_t, b, gamma, beta, phi)
    np.testing.assert_allclose(np.asarray(out), np.asarray(ref),
                               rtol=1e-4, atol=1e-5)

    print("KERNEL_OK")
</pallas_src>

<mosaic_0001>
module attributes {stable_mosaic.version = 11 : i64} {
  func.func @quantum_unity_kernel(%arg0: i32, %arg1: memref<8x128xf32, #tpu.memory_space<vmem>>, %arg2: memref<128x128xf32, #tpu.memory_space<vmem>>, %arg3: memref<1x128xf32, #tpu.memory_space<vmem>>, %arg4: memref<1x128xf32, #tpu.memory_space<vmem>>, %arg5: memref<1x128xf32, #tpu.memory_space<vmem>>, %arg6: memref<1x128xf32, #tpu.memory_space<vmem>>, %arg7: memref<1x128xf32, #tpu.memory_space<vmem>>, %arg8: memref<8x128xf32, #tpu.memory_space<vmem>>) attributes {dimension_semantics = [#tpu.dimension_semantics<parallel>], iteration_bounds = array<i64: 1>, scalar_prefetch = 0 : i64, scratch_operands = 0 : i64, tpu.core_type = #tpu.core_type<tc>, window_params = [{transform_indices = @transform_0, window_bounds = array<i64: 8, 128>}, {pipeline_mode = #tpu.pipeline_mode<synchronous>, transform_indices = @transform_1, window_bounds = array<i64: 128, 128>}, {pipeline_mode = #tpu.pipeline_mode<synchronous>, transform_indices = @transform_2, window_bounds = array<i64: 1, 128>}, {pipeline_mode = #tpu.pipeline_mode<synchronous>, transform_indices = @transform_3, window_bounds = array<i64: 1, 128>}, {pipeline_mode = #tpu.pipeline_mode<synchronous>, transform_indices = @transform_4, window_bounds = array<i64: 1, 128>}, {pipeline_mode = #tpu.pipeline_mode<synchronous>, transform_indices = @transform_5, window_bounds = array<i64: 1, 128>}, {pipeline_mode = #tpu.pipeline_mode<synchronous>, transform_indices = @transform_6, window_bounds = array<i64: 1, 128>}, {transform_indices = @transform_7, window_bounds = array<i64: 8, 128>}]} {
    %c0 = arith.constant 0 : index
    %c0_0 = arith.constant 0 : index
    %0 = vector.load %arg1[%c0, %c0_0] : memref<8x128xf32, #tpu.memory_space<vmem>>, vector<8x128xf32>
    %c0_1 = arith.constant 0 : index
    %c0_2 = arith.constant 0 : index
    %1 = vector.load %arg2[%c0_1, %c0_2] : memref<128x128xf32, #tpu.memory_space<vmem>>, vector<128x128xf32>
    %cst = arith.constant dense<0.000000e+00> : vector<8x128xf32>
    %2 = tpu.matmul %0, %1, %cst {dimension_numbers = #tpu.dot_dimension_numbers<[1], [0], [0], [1], [0, 0, 1, 1], [], []>} : vector<8x128xf32>, vector<128x128xf32>, vector<8x128xf32> -> vector<8x128xf32>
    %c0_3 = arith.constant 0 : index
    %c0_4 = arith.constant 0 : index
    %3 = vector.load %arg3[%c0_3, %c0_4] : memref<1x128xf32, #tpu.memory_space<vmem>>, vector<1x128xf32>
    %4 = vector.broadcast %3 : vector<1x128xf32> to vector<8x128xf32>
    %5 = arith.addf %2, %4 : vector<8x128xf32>
    %6 = tpu.iota {dimensions = array<i32: 1>} : vector<8x128xi32>
    %c64_i32 = arith.constant 64 : i32
    %7 = vector.broadcast %c64_i32 : i32 to vector<8x128xi32>
    %8 = arith.cmpi slt, %6, %7 : vector<8x128xi32>
    %cst_5 = arith.constant dense<0.000000e+00> : vector<8xf32>
    %9 = vector.multi_reduction <add>, %5, %cst_5 [1] : vector<8x128xf32> to vector<8xf32>
    %10 = vector.shape_cast %9 : vector<8xf32> to vector<8x1xf32>
    %cst_6 = arith.constant 0.000000e+00 : f32
    %11 = vector.broadcast %cst_6 : f32 to vector<8x128xf32>
    %12 = arith.select %8, %5, %11 : vector<8x128xi1>, vector<8x128xf32>
    %cst_7 = arith.constant dense<0.000000e+00> : vector<8xf32>
    %13 = vector.multi_reduction <add>, %12, %cst_7 [1] : vector<8x128xf32> to vector<8xf32>
    %14 = vector.shape_cast %13 : vector<8xf32> to vector<8x1xf32>
    %15 = arith.subf %10, %14 : vector<8x1xf32>
    %16 = vector.shape_cast %14 : vector<8x1xf32> to vector<8x1xf32>
    %17 = vector.broadcast %16 : vector<8x1xf32> to vector<8x128xf32>
    %18 = vector.shape_cast %15 : vector<8x1xf32> to vector<8x1xf32>
    %19 = vector.broadcast %18 : vector<8x1xf32> to vector<8x128xf32>
    %20 = arith.select %8, %17, %19 : vector<8x128xi1>, vector<8x128xf32>
    %cst_8 = arith.constant 1.562500e-02 : f32
    %21 = vector.broadcast %cst_8 : f32 to vector<8x128xf32>
    %22 = arith.mulf %20, %21 : vector<8x128xf32>
    %23 = arith.subf %5, %22 : vector<8x128xf32>
    %24 = arith.mulf %23, %23 : vector<8x128xf32>
    %cst_9 = arith.constant dense<0.000000e+00> : vector<8xf32>
    %25 = vector.multi_reduction <add>, %24, %cst_9 [1] : vector<8x128xf32> to vector<8xf32>
    %26 = vector.shape_cast %25 : vector<8xf32> to vector<8x1xf32>
    %cst_10 = arith.constant 0.000000e+00 : f32
    %27 = vector.broadcast %cst_10 : f32 to vector<8x128xf32>
    %28 = arith.select %8, %24, %27 : vector<8x128xi1>, vector<8x128xf32>
    %cst_11 = arith.constant dense<0.000000e+00> : vector<8xf32>
    %29 = vector.multi_reduction <add>, %28, %cst_11 [1] : vector<8x128xf32> to vector<8xf32>
    %30 = vector.shape_cast %29 : vector<8xf32> to vector<8x1xf32>
    %31 = arith.subf %26, %30 : vector<8x1xf32>
    %32 = vector.shape_cast %30 : vector<8x1xf32> to vector<8x1xf32>
    %33 = vector.broadcast %32 : vector<8x1xf32> to vector<8x128xf32>
    %34 = vector.shape_cast %31 : vector<8x1xf32> to vector<8x1xf32>
    %35 = vector.broadcast %34 : vector<8x1xf32> to vector<8x128xf32>
    %36 = arith.select %8, %33, %35 : vector<8x128xi1>, vector<8x128xf32>
    %cst_12 = arith.constant 1.562500e-02 : f32
    %37 = vector.broadcast %cst_12 : f32 to vector<8x128xf32>
    %38 = arith.mulf %36, %37 : vector<8x128xf32>
    %cst_13 = arith.constant 9.99999974E-6 : f32
    %39 = vector.broadcast %cst_13 : f32 to vector<8x128xf32>
    %40 = arith.addf %38, %39 : vector<8x128xf32>
    %41 = math.rsqrt %40 : vector<8x128xf32>
    %42 = arith.mulf %23, %41 : vector<8x128xf32>
    %c0_14 = arith.constant 0 : index
    %c0_15 = arith.constant 0 : index
    %43 = vector.load %arg4[%c0_14, %c0_15] : memref<1x128xf32, #tpu.memory_space<vmem>>, vector<1x128xf32>
    %44 = vector.broadcast %43 : vector<1x128xf32> to vector<8x128xf32>
    %45 = arith.mulf %42, %44 : vector<8x128xf32>
    %c0_16 = arith.constant 0 : index
    %c0_17 = arith.constant 0 : index
    %46 = vector.load %arg5[%c0_16, %c0_17] : memref<1x128xf32, #tpu.memory_space<vmem>>, vector<1x128xf32>
    %47 = vector.broadcast %46 : vector<1x128xf32> to vector<8x128xf32>
    %48 = arith.addf %45, %47 : vector<8x128xf32>
    %49 = math.sin %48 : vector<8x128xf32>
    %c0_18 = arith.constant 0 : index
    %c0_19 = arith.constant 0 : index
    %50 = vector.load %arg6[%c0_18, %c0_19] : memref<1x128xf32, #tpu.memory_space<vmem>>, vector<1x128xf32>
    %51 = vector.broadcast %50 : vector<1x128xf32> to vector<8x128xf32>
    %52 = arith.mulf %42, %51 : vector<8x128xf32>
    %c0_20 = arith.constant 0 : index
    %c0_21 = arith.constant 0 : index
    %53 = vector.load %arg7[%c0_20, %c0_21] : memref<1x128xf32, #tpu.memory_space<vmem>>, vector<1x128xf32>
    %54 = vector.broadcast %53 : vector<1x128xf32> to vector<8x128xf32>
    %55 = arith.addf %52, %54 : vector<8x128xf32>
    %56 = math.cos %55 : vector<8x128xf32>
    %57 = arith.addf %49, %56 : vector<8x128xf32>
    %cst_22 = arith.constant dense<0.000000e+00> : vector<8xf32>
    %58 = vector.multi_reduction <add>, %57, %cst_22 [1] : vector<8x128xf32> to vector<8xf32>
    %59 = vector.shape_cast %58 : vector<8xf32> to vector<8x1xf32>
    %cst_23 = arith.constant 0.000000e+00 : f32
    %60 = vector.broadcast %cst_23 : f32 to vector<8x128xf32>
    %61 = arith.select %8, %57, %60 : vector<8x128xi1>, vector<8x128xf32>
    %cst_24 = arith.constant dense<0.000000e+00> : vector<8xf32>
    %62 = vector.multi_reduction <add>, %61, %cst_24 [1] : vector<8x128xf32> to vector<8xf32>
    %63 = vector.shape_cast %62 : vector<8xf32> to vector<8x1xf32>
    %64 = arith.subf %59, %63 : vector<8x1xf32>
    %65 = vector.shape_cast %63 : vector<8x1xf32> to vector<8x1xf32>
    %66 = vector.broadcast %65 : vector<8x1xf32> to vector<8x128xf32>
    %67 = vector.shape_cast %64 : vector<8x1xf32> to vector<8x1xf32>
    %68 = vector.broadcast %67 : vector<8x1xf32> to vector<8x128xf32>
    %69 = arith.select %8, %66, %68 : vector<8x128xi1>, vector<8x128xf32>
    %cst_25 = arith.constant 1.562500e-02 : f32
    %70 = vector.broadcast %cst_25 : f32 to vector<8x128xf32>
    %71 = arith.mulf %69, %70 : vector<8x128xf32>
    %c0_26 = arith.constant 0 : index
    %c0_27 = arith.constant 0 : index
    %72 = vector.load %arg8[%c0_26, %c0_27] : memref<8x128xf32, #tpu.memory_space<vmem>>, vector<8x128xf32>
    tpu.vector_store %arg8[%c0_26, %c0_27], %71 {strides = array<i32>} : memref<8x128xf32, #tpu.memory_space<vmem>>, vector<8x128xf32>,
    return
  }
  func.func @transform_0(%arg0: i32) -> (i32, i32) {
    %c0_i32 = arith.constant 0 : i32
    %c0_i32_0 = arith.constant 0 : i32
    return %arg0, %c0_i32 : i32, i32
  }
  func.func @transform_1(%arg0: i32) -> (i32, i32) {
    %c0_i32 = arith.constant 0 : i32
    %c0_i32_0 = arith.constant 0 : i32
    %c0_i32_1 = arith.constant 0 : i32
    return %c0_i32, %c0_i32_0 : i32, i32
  }
  func.func @transform_2(%arg0: i32) -> (i32, i32) {
    %c0_i32 = arith.constant 0 : i32
    %c0_i32_0 = arith.constant 0 : i32
    %c0_i32_1 = arith.constant 0 : i32
    return %c0_i32, %c0_i32_0 : i32, i32
  }
  func.func @transform_3(%arg0: i32) -> (i32, i32) {
    %c0_i32 = arith.constant 0 : i32
    %c0_i32_0 = arith.constant 0 : i32
    %c0_i32_1 = arith.constant 0 : i32
    return %c0_i32, %c0_i32_0 : i32, i32
  }
  func.func @transform_4(%arg0: i32) -> (i32, i32) {
    %c0_i32 = arith.constant 0 : i32
    %c0_i32_0 = arith.constant 0 : i32
    %c0_i32_1 = arith.constant 0 : i32
    return %c0_i32, %c0_i32_0 : i32, i32
  }
  func.func @transform_5(%arg0: i32) -> (i32, i32) {
    %c0_i32 = arith.constant 0 : i32
    %c0_i32_0 = arith.constant 0 : i32
    %c0_i32_1 = arith.constant 0 : i32
    return %c0_i32, %c0_i32_0 : i32, i32
  }
  func.func @transform_6(%arg0: i32) -> (i32, i32) {
    %c0_i32 = arith.constant 0 : i32
    %c0_i32_0 = arith.constant 0 : i32
    %c0_i32_1 = arith.constant 0 : i32
    return %c0_i32, %c0_i32_0 : i32, i32
  }
  func.func @transform_7(%arg0: i32) -> (i32, i32) {
    %c0_i32 = arith.constant 0 : i32
    %c0_i32_0 = arith.constant 0 : i32
    return %arg0, %c0_i32 : i32, i32
  }
}

</mosaic_0001>

<llo_original>
// kernel: quantum_neural_unity.1
$region0: #{quantum_neural_unity.1}
  #allocation0 [shape = 'u32[]', space=smem, size = 0x4, offset = 0x4, fixed_abs, tag = 'smem constant byte address 0x4 - core index']
  #allocation1 [shape = 'u32[144,128]{1,0:T(1,128)}', space=vmem, size = 0x12000, scoped, tag = 'internal scratch']
  %s0 = inlined_call_operand.vmem [shape: f32[8,128], index: 0, kind: input, shape index: {}]
  %s1 = inlined_call_operand.vmem [shape: f32[128,128], index: 1, kind: input, shape index: {}]
  %s2 = inlined_call_operand.vmem [shape: f32[1,128], index: 2, kind: input, shape index: {}]
  %s3 = inlined_call_operand.vmem [shape: f32[1,128], index: 3, kind: input, shape index: {}]
  %s4 = inlined_call_operand.vmem [shape: f32[1,128], index: 4, kind: input, shape index: {}]
  %s5 = inlined_call_operand.vmem [shape: f32[1,128], index: 5, kind: input, shape index: {}]
  %s6 = inlined_call_operand.vmem [shape: f32[1,128], index: 6, kind: input, shape index: {}]
  %s7 = inlined_call_operand.vmem [shape: f32[8,128], index: 7, kind: output, shape index: {}]
  %s8 = sld [smem:[#allocation0]]
  $region38: #{quantum_neural_unity.1} parent=0
    _
  %s10 = ssub.s32 1, %s8
  %s11 = scalar_select 0, %s10, %s8
  // Predicated region
  $region2: #{quantum_neural_unity.1} parent=0 // pred_check
    _
  $region3: #{quantum_neural_unity.1} parent=0 // pred_check_branch
    %13 = sbr.rel (0) target = $region5
  $region4: #{quantum_neural_unity.1} parent=0 // pred_region
    _
  $region5: #{quantum_neural_unity.1} parent=0 // pred_fallthru
    _
  // Predicated region
  $region6: #{quantum_neural_unity.1} parent=0 // pred_check
    _
  $region7: #{quantum_neural_unity.1} parent=0 // pred_check_branch
    %15 = sbr.rel (0) target = $region9
  $region8: #{quantum_neural_unity.1} parent=0 // pred_region
    _
  $region9: #{quantum_neural_unity.1} parent=0 // pred_fallthru
    _
  // Predicated region
  $region10: #{quantum_neural_unity.1} parent=0 // pred_check
    _
  $region11: #{quantum_neural_unity.1} parent=0 // pred_check_branch
    %17 = sbr.rel (0) target = $region13
  $region12: #{quantum_neural_unity.1} parent=0 // pred_region
    _
  $region13: #{quantum_neural_unity.1} parent=0 // pred_fallthru
    _
  // Predicated region
  $region14: #{quantum_neural_unity.1} parent=0 // pred_check
    _
  $region15: #{quantum_neural_unity.1} parent=0 // pred_check_branch
    %19 = sbr.rel (0) target = $region17
  $region16: #{quantum_neural_unity.1} parent=0 // pred_region
    _
  $region17: #{quantum_neural_unity.1} parent=0 // pred_fallthru
    _
  // Predicated region
  $region18: #{quantum_neural_unity.1} parent=0 // pred_check
    _
  $region19: #{quantum_neural_unity.1} parent=0 // pred_check_branch
    %21 = sbr.rel (0) target = $region21
  $region20: #{quantum_neural_unity.1} parent=0 // pred_region
    _
  $region21: #{quantum_neural_unity.1} parent=0 // pred_fallthru
    _
  // Predicated region
  $region22: #{quantum_neural_unity.1} parent=0 // pred_check
    _
  $region23: #{quantum_neural_unity.1} parent=0 // pred_check_branch
    %23 = sbr.rel (0) target = $region25
  $region24: #{quantum_neural_unity.1} parent=0 // pred_region
    _
  $region25: #{quantum_neural_unity.1} parent=0 // pred_fallthru
    _
  // Predicated region
  $region26: #{quantum_neural_unity.1} parent=0 // pred_check
    _
  $region27: #{quantum_neural_unity.1} parent=0 // pred_check_branch
    %25 = sbr.rel (0) target = $region29
  $region28: #{quantum_neural_unity.1} parent=0 // pred_region
    _
  $region29: #{quantum_neural_unity.1} parent=0 // pred_fallthru
    _
  %v26 = vld [vmem:[%s0] sm:$0xff]
  %v27 = vld [vmem:[%s1] sm:$0xff]
  %v28 = vld [vmem:[%s1 + $0x8] sm:$0xff]
  %v29 = vld [vmem:[%s1 + $0x10] sm:$0xff]
  %v30 = vld [vmem:[%s1 + $0x18] sm:$0xff]
  %v31 = vld [vmem:[%s1 + $0x20] sm:$0xff]
  %v32 = vld [vmem:[%s1 + $0x28] sm:$0xff]
  %v33 = vld [vmem:[%s1 + $0x30] sm:$0xff]
  %v34 = vld [vmem:[%s1 + $0x38] sm:$0xff]
  %v35 = vld [vmem:[%s1 + $0x40] sm:$0xff]
  %v36 = vld [vmem:[%s1 + $0x48] sm:$0xff]
  %v37 = vld [vmem:[%s1 + $0x50] sm:$0xff]
  %v38 = vld [vmem:[%s1 + $0x58] sm:$0xff]
  %v39 = vld [vmem:[%s1 + $0x60] sm:$0xff]
  %v40 = vld [vmem:[%s1 + $0x68] sm:$0xff]
  %v41 = vld [vmem:[%s1 + $0x70] sm:$0xff]
  %v42 = vld [vmem:[%s1 + $0x78] sm:$0xff]
  %v43 = vld [vmem:[%s2] sm:$0x1]
  %v45 = vlaneseq
  %v46 = vshrl.u32 %v45, 7
  %v47 = vsub.s32 0, %v46
  %v48 = vrot.slane %v43, %v47
  %50 = vmatprep.subr.mxu0 0.0
  %51 = vmatpush1.msra.mxu0 %v27
  %52 = vmatprep.subr.mxu0 0.0
  %53 = vmatpush1.msra.mxu0 %v28
  %54 = vmatprep.subr.mxu0 0.0
  %55 = vmatpush1.msra.mxu0 %v29
  %56 = vmatprep.subr.mxu0 0.0
  %57 = vmatpush1.msra.mxu0 %v30
  %58 = vmatprep.subr.mxu0 0.0
  %59 = vmatpush1.msra.mxu0 %v31
  %60 = vmatprep.subr.mxu0 0.0
  %61 = vmatpush1.msra.mxu0 %v32
  %62 = vmatprep.subr.mxu0 0.0
  %63 = vmatpush1.msra.mxu0 %v33
  %64 = vmatprep.subr.mxu0 0.0
  %65 = vmatpush1.msra.mxu0 %v34
  %66 = vmatprep.subr.mxu0 0.0
  %67 = vmatpush1.msra.mxu0 %v35
  %68 = vmatprep.subr.mxu0 0.0
  %69 = vmatpush1.msra.mxu0 %v36
  %70 = vmatprep.subr.mxu0 0.0
  %71 = vmatpush1.msra.mxu0 %v37
  %72 = vmatprep.subr.mxu0 0.0
  %73 = vmatpush1.msra.mxu0 %v38
  %74 = vmatprep.subr.mxu0 0.0
  %75 = vmatpush1.msra.mxu0 %v39
  %76 = vmatprep.subr.mxu0 0.0
  %77 = vmatpush1.msra.mxu0 %v40
  %78 = vmatprep.subr.mxu0 0.0
  %79 = vmatpush1.msra.mxu0 %v41
  %80 = vmatprep.subr.mxu0 0.0
  %81 = vmatpush1.msra.mxu0 %v42
  %82 = vmatprep.subr.mxu0 0.0
  %83 = vmatpush1.msra.mxu0 0.0
  %84 = vmatprep.subr.mxu0 0.0
  %85 = vmatpush1.msra.mxu0 0.0
  %86 = vmatprep.subr.mxu0 0.0
  %87 = vmatpush1.msra.mxu0 0.0
  %88 = vmatprep.subr.mxu0 0.0
  %89 = vmatpush1.msra.mxu0 0.0
  %90 = vmatprep.subr.mxu0 0.0
  %91 = vmatpush1.msra.mxu0 0.0
  %92 = vmatprep.subr.mxu0 0.0
  %93 = vmatpush1.msra.mxu0 0.0
  %94 = vmatprep.subr.mxu0 0.0
  %95 = vmatpush1.msra.mxu0 0.0
  %96 = vmatprep.subr.mxu0 0.0
  %97 = vmatpush1.msra.mxu0 0.0
  %98 = vmatprep.subr.mxu0 0.0
  %99 = vmatpush1.msra.mxu0 0.0
  %100 = vmatprep.subr.mxu0 0.0
  %101 = vmatpush1.msra.mxu0 0.0
  %102 = vmatprep.subr.mxu0 0.0
  %103 = vmatpush1.msra.mxu0 0.0
  %104 = vmatprep.subr.mxu0 0.0
  %105 = vmatpush1.msra.mxu0 0.0
  %106 = vmatprep.subr.mxu0 0.0
  %107 = vmatpush1.msra.mxu0 0.0
  %108 = vmatprep.subr.mxu0 0.0
  %109 = vmatpush1.msra.mxu0 0.0
  %110 = vmatprep.subr.mxu0 0.0
  %111 = vmatpush1.msra.mxu0 0.0
  %112 = vmatprep.subr.mxu0 0.0
  %113 = vmatpush1.msra.mxu0 0.0
  %114 = vmatprep.mubr.f32.mxu0 0.0
  %115 = vmatmul.mubr.f32.gmra.mrb[0].mxu0 %v26
  %v116 = vpop.f32.mrb[0].mxu0
  %v117 = vadd.f32 %v48, %v116
  %v118 = vpop.f32.mrb[0].mxu0
  %119 = vdwg.mxu0
  %v120 = vlaneseq
  %v121 = vand.u32 %v120, 127
  %vm122 = vcmp.lt.s32.totalorder %v121, 64
  %123 = vadd.xlane.f32.xlu0 %v117
  %v124 = vpop.xlane.xlu0 %123
  %v125 = vsel %vm122, %v117, 0.0
  %126 = vadd.xlane.f32.xlu0 %v125
  %v127 = vpop.xlane.xlu0 %126
  %v128 = vsub.f32 %v124, %v127
  %v129 = vsel %vm122, %v127, %v128
  %v130 = vmul.f32 %v129, 0.015625
  %v131 = vsub.f32 %v117, %v130
  %v132 = vmul.f32 %v131, %v131
  %133 = vadd.xlane.f32.xlu0 %v132
  %v134 = vpop.xlane.xlu0 %133
  %v135 = vsel %vm122, %v132, 0.0
  %136 = vadd.xlane.f32.xlu0 %v135
  %v137 = vpop.xlane.xlu0 %136
  %v138 = vsub.f32 %v134, %v137
  %v139 = vsel %vm122, %v137, %v138
  %v140 = vmul.f32 %v139, 0.015625
  %v141 = vadd.f32 %v140, 1e-05
  %v142 = vrsqrt.pop %v141
  %v143 = vmul.f32 %v131, %v142
  %v144 = vld [vmem:[%s3] sm:$0x1]
  %v146 = vlaneseq
  %v147 = vshrl.u32 %v146, 7
  %v148 = vsub.s32 0, %v147
  %v149 = vrot.slane %v144, %v148
  %v151 = vmul.f32 %v143, %v149
  %v152 = vld [vmem:[%s4] sm:$0x1]
  %v154 = vlaneseq
  %v155 = vshrl.u32 %v154, 7
  %v156 = vsub.s32 0, %v155
  %v157 = vrot.slane %v152, %v156
  %v159 = vadd.f32 %v151, %v157
  %v160 = vand.u32 2147483647, %v159
  %vm161 = vcmp.le.f32.partialorder %v160, 0.7853982
  %vm162 = vcmp.lt.s32.totalorder %v159, 0
  %v163 = vand.u32 %v159, 2139095040
  %v164 = vshrl.u32 %v163, 23
  %v165 = vsub.s32 %v164, 127
  %v166 = vand.u32 2147483647, %v159
  %v167 = vand.u32 %v166, 8388607
  %v168 = vor.u32 %v167, 8388608
  %v169 = vsub.s32 0, %v168
  %v170 = vadd.s32 %v165, 1
  %vm171 = vcmp.gt.s32.totalorder %v170, 0
  %v172 = vsel %vm171, %v170, 0
  %v173 = vshrl.u32 %v172, 5
  %v174 = vand.u32 %v172, 31
  %v175 = vsub.s32 32, %v174
  %v176 = vshrl.u32 683565275, %v175
  %v177 = vshll.u32 683565275, %v174
  %v178 = vshrl.u32 2475754826, %v175
  %v179 = vor.u32 %v177, %v178
  %v180 = vshll.u32 2475754826, %v174
  %v181 = vshrl.u32 2131351028, %v175
  %v182 = vor.u32 %v180, %v181
  %v183 = vshll.u32 2131351028, %v174
  %v184 = vshrl.u32 2102212464, %v175
  %v185 = vor.u32 %v183, %v184
  %v186 = vshll.u32 2102212464, %v174
  %v187 = vshrl.u32 920167782, %v175
  %v188 = vor.u32 %v186, %v187
  %v189 = vshll.u32 920167782, %v174
  %v190 = vshrl.u32 1326507024, %v175
  %v191 = vor.u32 %v189, %v190
  %vm192 = vcmp.lt.s32.totalorder %v173, 1
  %vm193 = vcmp.lt.s32.totalorder %v173, 2
  %vm194 = vcmp.lt.s32.totalorder %v173, 3
  %vm195 = vcmp.lt.s32.totalorder %v173, 4
  %v196 = vsel %vm192, %v176, %v179
  %v197 = vsel %vm195, %v185, 2102212464
  %v198 = vsel %vm194, %v182, %v197
  %v199 = vsel %vm193, %v196, %v198
  %v200 = vsel %vm192, %v179, %v182
  %v201 = vsel %vm195, %v188, 920167782
  %v202 = vsel %vm194, %v185, %v201
  %v203 = vsel %vm193, %v200, %v202
  %v204 = vsel %vm192, %v182, %v185
  %v205 = vsel %vm195, %v191, 1326507024
  %v206 = vsel %vm194, %v188, %v205
  %v207 = vsel %vm193, %v204, %v206
  %v208 = vshll.u32 %v168, 8
  %v209 = vmul.u32.u64.compose %v208, %v207
  %v210 = vextract.low.u32 %v209
  %v211 = vextract.high.u32 %v209
  %v212 = vmul.u32.u64.compose %v208, %v203
  %v213 = vextract.low.u32 %v212
  %v214 = vextract.high.u32 %v212
  %v215 = vmul.u32 %v208, %v199
  %v216 = vadd.s32 %v211, %v213
  %vm217 = vc.u32 %v211, %v213
  %v218 = vadd.s32 %v214, 1
  %v219 = vsel %vm217, %v218, %v214
  %v220 = vadd.s32 %v215, %v219
  %v221 = vadd.s32 %v220, 536870912
  %v222 = vshrl.u32 %v221, 30
  %v223 = vshll.u32 %v222, 30
  %v224 = vsub.s32 %v220, %v223
  %vm225 = vcmp.lt.s32.totalorder %v224, 0
  %v226 = vsub.s32 0, %v224
  %v227 = vsel %vm225, %v226, %v224
  %v228 = vclz %v227
  %v229 = vsub.s32 %v228, 2
  %vm230 = vcmp.gt.s32.totalorder 0, %v229
  %v231 = vsel %vm230, 0, %v229
  %v232 = vsub.s32 32, %v231
  %v233 = vshll.u32 %v224, %v231
  %v234 = vshrl.u32 %v216, %v232
  %v235 = vor.u32 %v233, %v234
  %v236 = vsub.s32 4294967266, %v231
  %v237 = vadd.s32 %v236, 127
  %v238 = vshll.u32 %v237, 23
  %v239 = vor.u32 4788187, %v238
  %v240 = vand.u32 2147483647, %v239
  %v242 = vcvt.s32.f32 %v235
  %v243 = vmul.f32 %v242, %v240
  %v244 = vxor.u32 %v243, 2147483648
  %v245 = vsel %vm162, %v244, %v243
  %v246 = vsub.s32 4, %v222
  %v247 = vsel %vm162, %v246, %v222
  %v248 = vsel %vm161, %v159, %v245
  %v249 = vsel %vm161, 0, %v247
  %v250 = vcosq.f32.pop %v248
  %v251 = vsinq.f32.pop %v248
  %vm252 = vweird.f32 %v159
  %v253 = vadd.s32 %v249, 3
  %v254 = vand.u32 %v253, 3
  %vm255 = vcmp.lt.s32.totalorder %v254, 2
  %vm256 = vcmp.eq.s32.totalorder %v254, 0
  %v257 = vxor.u32 %v251, 2147483648
  %v258 = vsel %vm256, %v250, %v257
  %vm259 = vcmp.eq.s32.totalorder %v254, 2
  %v260 = vxor.u32 %v250, 2147483648
  %v261 = vsel %vm259, %v260, %v251
  %v262 = vsel %vm255, %v258, %v261
  %v263 = vsel %vm252, nan, %v262
  %v264 = vld [vmem:[%s5] sm:$0x1]
  %v266 = vlaneseq
  %v267 = vshrl.u32 %v266, 7
  %v268 = vsub.s32 0, %v267
  %v269 = vrot.slane %v264, %v268
  %v271 = vmul.f32 %v143, %v269
  %v272 = vld [vmem:[%s6] sm:$0x1]
  %v274 = vlaneseq
  %v275 = vshrl.u32 %v274, 7
  %v276 = vsub.s32 0, %v275
  %v277 = vrot.slane %v272, %v276
  %v279 = vadd.f32 %v271, %v277
  %v280 = vand.u32 2147483647, %v279
  %vm281 = vcmp.le.f32.partialorder %v280, 0.7853982
  %vm282 = vcmp.lt.s32.totalorder %v279, 0
  %v283 = vand.u32 %v279, 2139095040
  %v284 = vshrl.u32 %v283, 23
  %v285 = vsub.s32 %v284, 127
  %v286 = vand.u32 2147483647, %v279
  %v287 = vand.u32 %v286, 8388607
  %v288 = vor.u32 %v287, 8388608
  %v289 = vsub.s32 0, %v288
  %v290 = vadd.s32 %v285, 1
  %vm291 = vcmp.gt.s32.totalorder %v290, 0
  %v292 = vsel %vm291, %v290, 0
  %v293 = vshrl.u32 %v292, 5
  %v294 = vand.u32 %v292, 31
  %v295 = vsub.s32 32, %v294
  %v296 = vshrl.u32 683565275, %v295
  %v297 = vshll.u32 683565275, %v294
  %v298 = vshrl.u32 2475754826, %v295
  %v299 = vor.u32 %v297, %v298
  %v300 = vshll.u32 2475754826, %v294
  %v301 = vshrl.u32 2131351028, %v295
  %v302 = vor.u32 %v300, %v301
  %v303 = vshll.u32 2131351028, %v294
  %v304 = vshrl.u32 2102212464, %v295
  %v305 = vor.u32 %v303, %v304
  %v306 = vshll.u32 2102212464, %v294
  %v307 = vshrl.u32 920167782, %v295
  %v308 = vor.u32 %v306, %v307
  %v309 = vshll.u32 920167782, %v294
  %v310 = vshrl.u32 1326507024, %v295
  %v311 = vor.u32 %v309, %v310
  %vm312 = vcmp.lt.s32.totalorder %v293, 1
  %vm313 = vcmp.lt.s32.totalorder %v293, 2
  %vm314 = vcmp.lt.s32.totalorder %v293, 3
  %vm315 = vcmp.lt.s32.totalorder %v293, 4
  %v316 = vsel %vm312, %v296, %v299
  %v317 = vsel %vm315, %v305, 2102212464
  %v318 = vsel %vm314, %v302, %v317
  %v319 = vsel %vm313, %v316, %v318
  %v320 = vsel %vm312, %v299, %v302
  %v321 = vsel %vm315, %v308, 920167782
  %v322 = vsel %vm314, %v305, %v321
  %v323 = vsel %vm313, %v320, %v322
  %v324 = vsel %vm312, %v302, %v305
  %v325 = vsel %vm315, %v311, 1326507024
  %v326 = vsel %vm314, %v308, %v325
  %v327 = vsel %vm313, %v324, %v326
  %v328 = vshll.u32 %v288, 8
  %v329 = vmul.u32.u64.compose %v328, %v327
  %v330 = vextract.low.u32 %v329
  %v331 = vextract.high.u32 %v329
  %v332 = vmul.u32.u64.compose %v328, %v323
  %v333 = vextract.low.u32 %v332
  %v334 = vextract.high.u32 %v332
  %v335 = vmul.u32 %v328, %v319
  %v336 = vadd.s32 %v331, %v333
  %vm337 = vc.u32 %v331, %v333
  %v338 = vadd.s32 %v334, 1
  %v339 = vsel %vm337, %v338, %v334
  %v340 = vadd.s32 %v335, %v339
  %v341 = vadd.s32 %v340, 536870912
  %v342 = vshrl.u32 %v341, 30
  %v343 = vshll.u32 %v342, 30
  %v344 = vsub.s32 %v340, %v343
  %vm345 = vcmp.lt.s32.totalorder %v344, 0
  %v346 = vsub.s32 0, %v344
  %v347 = vsel %vm345, %v346, %v344
  %v348 = vclz %v347
  %v349 = vsub.s32 %v348, 2
  %vm350 = vcmp.gt.s32.totalorder 0, %v349
  %v351 = vsel %vm350, 0, %v349
  %v352 = vsub.s32 32, %v351
  %v353 = vshll.u32 %v344, %v351
  %v354 = vshrl.u32 %v336, %v352
  %v355 = vor.u32 %v353, %v354
  %v356 = vsub.s32 4294967266, %v351
  %v357 = vadd.s32 %v356, 127
  %v358 = vshll.u32 %v357, 23
  %v359 = vor.u32 4788187, %v358
  %v360 = vand.u32 2147483647, %v359
  %v362 = vcvt.s32.f32 %v355
  %v363 = vmul.f32 %v362, %v360
  %v364 = vxor.u32 %v363, 2147483648
  %v365 = vsel %vm282, %v364, %v363
  %v366 = vsub.s32 4, %v342
  %v367 = vsel %vm282, %v366, %v342
  %v368 = vsel %vm281, %v279, %v365
  %v369 = vsel %vm281, 0, %v367
  %v370 = vcosq.f32.pop %v368
  %v371 = vsinq.f32.pop %v368
  %vm372 = vweird.f32 %v279
  %v373 = vand.u32 %v369, 3
  %vm374 = vcmp.lt.s32.totalorder %v373, 2
  %vm375 = vcmp.eq.s32.totalorder %v373, 0
  %v376 = vxor.u32 %v371, 2147483648
  %v377 = vsel %vm375, %v370, %v376
  %vm378 = vcmp.eq.s32.totalorder %v373, 2
  %v379 = vxor.u32 %v370, 2147483648
  %v380 = vsel %vm378, %v379, %v371
  %v381 = vsel %vm374, %v377, %v380
  %v382 = vsel %vm372, nan, %v381
  %v383 = vadd.f32 %v263, %v382
  %384 = vadd.xlane.f32.xlu0 %v383
  %v385 = vpop.xlane.xlu0 %384
  %v386 = vsel %vm122, %v383, 0.0
  %387 = vadd.xlane.f32.xlu0 %v386
  %v388 = vpop.xlane.xlu0 %387
  %v389 = vsub.f32 %v385, %v388
  %v390 = vsel %vm122, %v388, %v389
  %v391 = vmul.f32 %v390, 0.015625
  %392 = vst [vmem:[%s7] sm:$0xff] %v391
  // Predicated region
  $region30: #{quantum_neural_unity.1} parent=0 // pred_check
    _
  $region31: #{quantum_neural_unity.1} parent=0 // pred_check_branch
    %394 = sbr.rel (0) target = $region33
  $region32: #{quantum_neural_unity.1} parent=0 // pred_region
    _
  $region33: #{quantum_neural_unity.1} parent=0 // pred_fallthru
    _
  // Predicated region
  $region34: #{quantum_neural_unity.1} parent=0 // pred_check
    _
  $region35: #{quantum_neural_unity.1} parent=0 // pred_check_branch
    %396 = sbr.rel (0) target = $region37
  $region36: #{quantum_neural_unity.1} parent=0 // pred_region
    _
  $region37: #{quantum_neural_unity.1} parent=0 // pred_fallthru
    _

</llo_original>
